<compile_context>
chip_gen: v7x
topology: tpu7x:2x2x1
jax: 0.10.0
libtpu: 0.0.40
codegen_flags: <defaults>
</compile_context>

<pallas_src>
import functools

import jax
import jax.numpy as jnp
from jax.experimental import pallas as pl
from jax.experimental.pallas import tpu as pltpu


def _round_up(a, b):
    return (a + b - 1) // b * b


def _focal_weight(base, gamma):
    """(1 - pt)**gamma with integer-gamma fast path (VPU only, no EUP)."""
    g = float(gamma)
    if g == 0.0:
        return jnp.ones_like(base)
    if g.is_integer() and 0.0 < g <= 16.0:
        w = base
        for _ in range(int(g) - 1):
            w = w * base
        return w
    # non-integer gamma: clamp base >= 0 to avoid NaN from exp(g*log(neg))
    return jnp.power(jnp.maximum(base, 0.0), g)


# ---------------------------------------------------------------------------
# Kernel A: 2-D logits (rows on sublanes, classes on lanes)
# ---------------------------------------------------------------------------
def _focal_kernel_rows(x_ref, t_ref, a_ref, out_ref, *, gamma, m_valid):
    i = pl.program_id(0)

    x = x_ref[...].astype(jnp.float32)          # (tile_m, C)
    t = t_ref[...]                              # (tile_m, 1) int32
    a = a_ref[...].astype(jnp.float32)          # (1, A)

    tile_m, c = x.shape
    num_a = a.shape[1]

    # log-softmax over the class (lane) axis, gathered at the target class
    mx = jnp.max(x, axis=-1, keepdims=True)
    lse = mx + jnp.log(jnp.sum(jnp.exp(x - mx), axis=-1, keepdims=True))

    cls = jax.lax.broadcasted_iota(jnp.int32, (tile_m, c), 1)
    onehot = cls == t
    x_t = jnp.sum(jnp.where(onehot, x, 0.0), axis=-1, keepdims=True)

    logpt = x_t - lse
    pt = jnp.exp(logpt)

    # at = alpha[target] via one-hot select over the small alpha table
    aidx = jax.lax.broadcasted_iota(jnp.int32, (tile_m, num_a), 1)
    at = jnp.sum(jnp.where(aidx == t, a, 0.0), axis=-1, keepdims=True)

    w = _focal_weight(1.0 - pt, gamma)
    loss = -w * (logpt * at)                    # (tile_m, 1)

    # mask rows added by padding (padded logits are zeros -> no NaN upstream)
    row = i * tile_m + jax.lax.broadcasted_iota(jnp.int32, (tile_m, 1), 0)
    loss = jnp.where(row < m_valid, loss, 0.0)

    out_ref[...] = jnp.sum(loss).reshape(1, 1, 1)


# ---------------------------------------------------------------------------
# Kernel B: channel-first logits (classes on sublanes, spatial on lanes)
# ---------------------------------------------------------------------------
def _focal_kernel_cfirst(x_ref, t_ref, a_ref, out_ref, *, gamma, s_valid):
    sb = pl.program_id(1)

    x = x_ref[...].astype(jnp.float32)          # (1, C, tile_s)
    t = t_ref[...]                              # (1, 1, tile_s) int32
    a = a_ref[...].astype(jnp.float32)          # (1, A, 1)

    _, c, tile_s = x.shape
    num_a = a.shape[1]

    # log-softmax over the class (sublane) axis
    mx = jnp.max(x, axis=1, keepdims=True)                                  # (1,1,ts)
    lse = mx + jnp.log(jnp.sum(jnp.exp(x - mx), axis=1, keepdims=True))

    cls = jax.lax.broadcasted_iota(jnp.int32, (1, c, tile_s), 1)
    onehot = cls == t
    x_t = jnp.sum(jnp.where(onehot, x, 0.0), axis=1, keepdims=True)

    logpt = x_t - lse
    pt = jnp.exp(logpt)

    aidx = jax.lax.broadcasted_iota(jnp.int32, (1, num_a, tile_s), 1)
    at = jnp.sum(jnp.where(aidx == t, a, 0.0), axis=1, keepdims=True)       # (1,1,ts)

    w = _focal_weight(1.0 - pt, gamma)
    loss = -w * (logpt * at)                                                # (1,1,ts)

    # mask spatial positions added by padding (padded logits are zeros)
    col = sb * tile_s + jax.lax.broadcasted_iota(jnp.int32, (1, 1, tile_s), 2)
    loss = jnp.where(col < s_valid, loss, 0.0)

    out_ref[...] = jnp.sum(loss).reshape(1, 1, 1, 1)


# ---------------------------------------------------------------------------
# Wrapper
# ---------------------------------------------------------------------------
_VMEM_LIMIT = 32 * 1024 * 1024
_TILE_BUDGET = 4 * 1024 * 1024   # logits bytes per tile (double-buffered by Pallas)


def _alpha_vector(alpha):
    if isinstance(alpha, (list, tuple)):
        return jnp.asarray(alpha, dtype=jnp.float32)
    return jnp.asarray([float(alpha), 1.0 - float(alpha)], jnp.float32)


def _focal_loss_rows(x, t, alpha_vec, gamma, tile_m=None):
    """2-D (M, C) path."""
    m, c = x.shape
    num_a = alpha_vec.shape[0]
    alpha_2d = alpha_vec.reshape(1, num_a)

    if tile_m is None:
        rows = max(8, _TILE_BUDGET // max(4 * c, 1))
        tile_m = min(_round_up(m, 8), (rows // 8) * 8)
    tile_m = max(8, (int(tile_m) // 8) * 8)

    mp = _round_up(m, tile_m)
    if mp != m:
        x = jnp.pad(x, ((0, mp - m), (0, 0)))
        t = jnp.pad(t, (0, mp - m))
    t2d = t.reshape(mp, 1)

    grid = (mp // tile_m,)
    kernel = functools.partial(_focal_kernel_rows, gamma=float(gamma), m_valid=m)

    partials = pl.pallas_call(
        kernel,
        out_shape=jax.ShapeDtypeStruct((grid[0], 1, 1), jnp.float32),
        grid_spec=pltpu.PrefetchScalarGridSpec(
            num_scalar_prefetch=0,
            grid=grid,
            in_specs=[
                pl.BlockSpec((tile_m, c), lambda i: (i, 0)),      # logits
                pl.BlockSpec((tile_m, 1), lambda i: (i, 0)),      # targets
                pl.BlockSpec((1, num_a), lambda i: (0, 0)),       # alpha table
            ],
            out_specs=pl.BlockSpec((1, 1, 1), lambda i: (i, 0, 0)),
        ),
        compiler_params=pltpu.CompilerParams(
            dimension_semantics=("parallel",),
            vmem_limit_bytes=_VMEM_LIMIT,
        ),
    )(x, t2d, alpha_2d)

    return jnp.sum(partials), m


def _focal_loss_cfirst(x, t, alpha_vec, gamma, tile_s=None):
    """Channel-first (N, C, S) path — avoids the full-tensor transpose."""
    n, c, s = x.shape
    num_a = alpha_vec.shape[0]
    alpha_3d = alpha_vec.reshape(1, num_a, 1)

    if tile_s is None:
        cols = max(128, _TILE_BUDGET // max(4 * c, 1))
        tile_s = (cols // 128) * 128
    tile_s = max(128, (int(tile_s) // 128) * 128)
    tile_s = min(tile_s, _round_up(s, 128))

    sp = _round_up(s, tile_s)
    if sp != s:
        x = jnp.pad(x, ((0, 0), (0, 0), (0, sp - s)))
        t = jnp.pad(t, ((0, 0), (0, sp - s)))
    t3d = t.reshape(n, 1, sp)

    grid = (n, sp // tile_s)
    kernel = functools.partial(_focal_kernel_cfirst, gamma=float(gamma), s_valid=s)

    partials = pl.pallas_call(
        kernel,
        out_shape=jax.ShapeDtypeStruct((n, grid[1], 1, 1), jnp.float32),
        grid_spec=pltpu.PrefetchScalarGridSpec(
            num_scalar_prefetch=0,
            grid=grid,
            in_specs=[
                pl.BlockSpec((1, c, tile_s), lambda i, j: (i, 0, j)),   # logits
                pl.BlockSpec((1, 1, tile_s), lambda i, j: (i, 0, j)),   # targets
                pl.BlockSpec((1, num_a, 1), lambda i, j: (0, 0, 0)),    # alpha table
            ],
            out_specs=pl.BlockSpec((1, 1, 1, 1), lambda i, j: (i, j, 0, 0)),
        ),
        compiler_params=pltpu.CompilerParams(
            dimension_semantics=("parallel", "parallel"),
            vmem_limit_bytes=_VMEM_LIMIT,
        ),
    )(x, t3d, alpha_3d)

    return jnp.sum(partials), n * s


def softmax_focal_loss(logits, target, *, gamma=2.0, alpha=0.25,
                       reduction="mean"):
    """Pallas TPU implementation of SoftmaxFocalLoss.forward."""
    logits = jnp.asarray(logits)
    t = jnp.asarray(target).reshape(-1).astype(jnp.int32)
    alpha_vec = _alpha_vector(alpha)

    if logits.ndim > 2:
        n, c = logits.shape[0], logits.shape[1]
        x3 = logits.reshape(n, c, -1)               # pure reshape, no data movement
        s = x3.shape[2]
        # channel-first kernel needs (C x 128) f32 block to fit comfortably in VMEM
        if c * 128 * 4 * 3 <= _VMEM_LIMIT // 2:
            total, m = _focal_loss_cfirst(x3, t.reshape(n, s), alpha_vec, gamma)
        else:
            # TODO(synk): huge-C case also wants a 2-pass (row, class)-tiled softmax;
            # for now fall back to the explicit transpose + row-tiled kernel.
            x2 = jnp.transpose(x3, (0, 2, 1)).reshape(-1, c)
            total, m = _focal_loss_rows(x2, t, alpha_vec, gamma)
    else:
        total, m = _focal_loss_rows(logits, t, alpha_vec, gamma)

    if reduction == "mean":
        return total / jnp.float32(m)
    return total


# ---------------------------------------------------------------------------
# Verification
# ---------------------------------------------------------------------------
def _reference(logits, target, gamma, alpha_vec, reduction):
    """Plain-JAX mirror of the PyTorch forward."""
    logits = jnp.asarray(logits)
    if logits.ndim > 2:
        n, c = logits.shape[0], logits.shape[1]
        x = jnp.transpose(logits.reshape(n, c, -1), (0, 2, 1)).reshape(-1, c)
    else:
        x = logits
    x = x.astype(jnp.float32)
    t = jnp.asarray(target).reshape(-1)
    logpt = jax.nn.log_softmax(x, axis=-1)
    logpt = jnp.take_along_axis(logpt, t[:, None], axis=1)[:, 0]
    pt = jnp.exp(logpt)
    at = alpha_vec[t]
    logpt = logpt * at
    loss = -1.0 * (1.0 - pt) ** gamma * logpt
    return loss.mean() if reduction == "mean" else loss.sum()


if __name__ == "__main__":
    key = jax.random.PRNGKey(0)
    k1, k2, k3, k4 = jax.random.split(key, 4)

    # Case 1: 4-D logits (N, C, H, W), per-class alpha list, mean reduction.
    N, C, H, W = 2, 4, 16, 16
    logits = jax.random.normal(k1, (N, C, H, W), dtype=jnp.float32)
    target = jax.random.randint(k2, (N, H, W), 0, C, dtype=jnp.int32)
    alpha_list = [0.1, 0.2, 0.3, 0.4]
    loss = softmax_focal_loss(logits, target, gamma=2.0, alpha=alpha_list,
                              reduction="mean")
    loss = jax.block_until_ready(loss)
    ref = _reference(logits, target, 2.0, jnp.asarray(alpha_list, jnp.float32),
                     "mean")
    assert jnp.allclose(loss, ref, rtol=1e-4, atol=1e-5), (loss, ref)

    # Case 2: 2-D logits, default scalar alpha (-> [0.25, 0.75]), sum reduction.
    M2, C2 = 8, 2
    logits2 = jax.random.normal(k3, (M2, C2), dtype=jnp.float32)
    target2 = jax.random.randint(k4, (M2,), 0, C2, dtype=jnp.int32)
    loss2 = softmax_focal_loss(logits2, target2, gamma=2.0, alpha=0.25,
                               reduction="sum")
    loss2 = jax.block_until_ready(loss2)
    ref2 = _reference(logits2, target2, 2.0,
                      jnp.asarray([0.25, 0.75], jnp.float32), "sum")
    assert jnp.allclose(loss2, ref2, rtol=1e-4, atol=1e-5), (loss2, ref2)

    # Case 3: non-aligned spatial size exercises the padding/mask path.
    H3, W3 = 9, 13
    logits3 = jax.random.normal(k1, (N, C, H3, W3), dtype=jnp.float32)
    target3 = jax.random.randint(k2, (N, H3, W3), 0, C, dtype=jnp.int32)
    loss3 = softmax_focal_loss(logits3, target3, gamma=2.0, alpha=alpha_list,
                               reduction="mean")
    loss3 = jax.block_until_ready(loss3)
    ref3 = _reference(logits3, target3, 2.0,
                      jnp.asarray(alpha_list, jnp.float32), "mean")
    assert jnp.allclose(loss3, ref3, rtol=1e-4, atol=1e-5), (loss3, ref3)

    print("KERNEL_OK")
</pallas_src>

<mosaic_0001>
module attributes {stable_mosaic.version = 11 : i64} {
  func.func @_focal_kernel_cfirst(%arg0: i32, %arg1: i32, %arg2: memref<1x4x256xf32, #tpu.memory_space<vmem>>, %arg3: memref<1x1x256xi32, #tpu.memory_space<vmem>>, %arg4: memref<1x4x1xf32, #tpu.memory_space<vmem>>, %arg5: memref<1x1x1x1xf32, #tpu.memory_space<vmem>>) attributes {dimension_semantics = [#tpu.dimension_semantics<parallel>, #tpu.dimension_semantics<parallel>], iteration_bounds = array<i64: 2, 1>, scalar_prefetch = 0 : i64, scratch_operands = 0 : i64, tpu.core_type = #tpu.core_type<tc>, window_params = [{transform_indices = @transform_0, window_bounds = array<i64: 1, 4, 256>}, {transform_indices = @transform_1, window_bounds = array<i64: 1, 1, 256>}, {pipeline_mode = #tpu.pipeline_mode<synchronous>, transform_indices = @transform_2, window_bounds = array<i64: 1, 4, 1>}, {transform_indices = @transform_3, window_bounds = array<i64: 1, 1, 1, 1>}]} {
    %c0 = arith.constant 0 : index
    %c0_0 = arith.constant 0 : index
    %c0_1 = arith.constant 0 : index
    %0 = vector.load %arg2[%c0, %c0_0, %c0_1] : memref<1x4x256xf32, #tpu.memory_space<vmem>>, vector<1x4x256xf32>
    %c0_2 = arith.constant 0 : index
    %c0_3 = arith.constant 0 : index
    %c0_4 = arith.constant 0 : index
    %1 = vector.load %arg3[%c0_2, %c0_3, %c0_4] : memref<1x1x256xi32, #tpu.memory_space<vmem>>, vector<1x1x256xi32>
    %c0_5 = arith.constant 0 : index
    %c0_6 = arith.constant 0 : index
    %c0_7 = arith.constant 0 : index
    %2 = vector.load %arg4[%c0_5, %c0_6, %c0_7] : memref<1x4x1xf32, #tpu.memory_space<vmem>>, vector<1x4x1xf32>
    %cst = arith.constant dense<0xFF800000> : vector<1x256xf32>
    %3 = vector.multi_reduction <maximumf>, %0, %cst [1] : vector<1x4x256xf32> to vector<1x256xf32>
    %4 = vector.shape_cast %3 : vector<1x256xf32> to vector<1x1x256xf32>
    %5 = vector.broadcast %4 : vector<1x1x256xf32> to vector<1x4x256xf32>
    %6 = arith.subf %0, %5 : vector<1x4x256xf32>
    %7 = math.exp %6 : vector<1x4x256xf32>
    %cst_8 = arith.constant dense<0.000000e+00> : vector<1x256xf32>
    %8 = vector.multi_reduction <add>, %7, %cst_8 [1] : vector<1x4x256xf32> to vector<1x256xf32>
    %9 = vector.shape_cast %8 : vector<1x256xf32> to vector<1x1x256xf32>
    %10 = math.log %9 : vector<1x1x256xf32>
    %11 = arith.addf %4, %10 : vector<1x1x256xf32>
    %12 = tpu.iota {dimensions = array<i32: 1>} : vector<1x4x256xi32>
    %13 = vector.broadcast %1 : vector<1x1x256xi32> to vector<1x4x256xi32>
    %14 = arith.cmpi eq, %12, %13 : vector<1x4x256xi32>
    %cst_9 = arith.constant 0.000000e+00 : f32
    %15 = vector.broadcast %cst_9 : f32 to vector<1x4x256xf32>
    %16 = arith.select %14, %0, %15 : vector<1x4x256xi1>, vector<1x4x256xf32>
    %cst_10 = arith.constant dense<0.000000e+00> : vector<1x256xf32>
    %17 = vector.multi_reduction <add>, %16, %cst_10 [1] : vector<1x4x256xf32> to vector<1x256xf32>
    %18 = vector.shape_cast %17 : vector<1x256xf32> to vector<1x1x256xf32>
    %19 = arith.subf %18, %11 : vector<1x1x256xf32>
    %20 = math.exp %19 : vector<1x1x256xf32>
    %21 = tpu.iota {dimensions = array<i32: 1>} : vector<1x4x256xi32>
    %22 = vector.broadcast %1 : vector<1x1x256xi32> to vector<1x4x256xi32>
    %23 = arith.cmpi eq, %21, %22 : vector<1x4x256xi32>
    %cst_11 = arith.constant 0.000000e+00 : f32
    %24 = vector.shape_cast %2 : vector<1x4x1xf32> to vector<1x4x1xf32>
    %25 = vector.broadcast %24 : vector<1x4x1xf32> to vector<1x4x256xf32>
    %26 = vector.broadcast %cst_11 : f32 to vector<1x4x256xf32>
    %27 = arith.select %23, %25, %26 : vector<1x4x256xi1>, vector<1x4x256xf32>
    %cst_12 = arith.constant dense<0.000000e+00> : vector<1x256xf32>
    %28 = vector.multi_reduction <add>, %27, %cst_12 [1] : vector<1x4x256xf32> to vector<1x256xf32>
    %29 = vector.shape_cast %28 : vector<1x256xf32> to vector<1x1x256xf32>
    %cst_13 = arith.constant 1.000000e+00 : f32
    %30 = vector.broadcast %cst_13 : f32 to vector<1x1x256xf32>
    %31 = arith.subf %30, %20 : vector<1x1x256xf32>
    %32 = arith.mulf %31, %31 : vector<1x1x256xf32>
    %cst_14 = arith.constant 0.000000e+00 : f32
    %33 = vector.broadcast %cst_14 : f32 to vector<1x1x256xf32>
    %34 = arith.subf %33, %32 : vector<1x1x256xf32>
    %35 = arith.mulf %19, %29 : vector<1x1x256xf32>
    %36 = arith.mulf %34, %35 : vector<1x1x256xf32>
    %c256_i32 = arith.constant 256 : i32
    %37 = arith.muli %arg1, %c256_i32 : i32
    %38 = tpu.iota {dimensions = array<i32: 2>} : vector<1x1x256xi32>
    %39 = vector.broadcast %37 : i32 to vector<1x1x256xi32>
    %40 = arith.addi %39, %38 : vector<1x1x256xi32>
    %c256_i32_15 = arith.constant 256 : i32
    %41 = vector.broadcast %c256_i32_15 : i32 to vector<1x1x256xi32>
    %42 = arith.cmpi slt, %40, %41 : vector<1x1x256xi32>
    %cst_16 = arith.constant 0.000000e+00 : f32
    %43 = vector.broadcast %cst_16 : f32 to vector<1x1x256xf32>
    %44 = arith.select %42, %36, %43 : vector<1x1x256xi1>, vector<1x1x256xf32>
    %45 = vector.shape_cast %44 : vector<1x1x256xf32> to vector<1x1x1x256xf32>
    %cst_17 = arith.constant dense<0.000000e+00> : vector<1xf32>
    %46 = vector.multi_reduction <add>, %45, %cst_17 [1, 2, 3] : vector<1x1x1x256xf32> to vector<1xf32>
    %47 = vector.shape_cast %46 : vector<1xf32> to vector<1x1x1x1xf32>
    %48 = vector.extract %47[0, 0, 0, 0] : f32 from vector<1x1x1x1xf32>
    %49 = vector.broadcast %48 : f32 to vector<1x1x1x1xf32>
    %c0_18 = arith.constant 0 : index
    %c0_19 = arith.constant 0 : index
    %c0_20 = arith.constant 0 : index
    %c0_21 = arith.constant 0 : index
    %50 = vector.load %arg5[%c0_18, %c0_19, %c0_20, %c0_21] : memref<1x1x1x1xf32, #tpu.memory_space<vmem>>, vector<1x1x1x1xf32>
    tpu.vector_store %arg5[%c0_18, %c0_19, %c0_20, %c0_21], %49 {strides = array<i32>} : memref<1x1x1x1xf32, #tpu.memory_space<vmem>>, vector<1x1x1x1xf32>,
    return
  }
  func.func @transform_0(%arg0: i32, %arg1: i32) -> (i32, i32, i32) {
    %c0_i32 = arith.constant 0 : i32
    %c0_i32_0 = arith.constant 0 : i32
    return %arg0, %c0_i32, %arg1 : i32, i32, i32
  }
  func.func @transform_1(%arg0: i32, %arg1: i32) -> (i32, i32, i32) {
    %c0_i32 = arith.constant 0 : i32
    %c0_i32_0 = arith.constant 0 : i32
    return %arg0, %c0_i32, %arg1 : i32, i32, i32
  }
  func.func @transform_2(%arg0: i32, %arg1: i32) -> (i32, i32, i32) {
    %c0_i32 = arith.constant 0 : i32
    %c0_i32_0 = arith.constant 0 : i32
    %c0_i32_1 = arith.constant 0 : i32
    %c0_i32_2 = arith.constant 0 : i32
    return %c0_i32, %c0_i32_0, %c0_i32_1 : i32, i32, i32
  }
  func.func @transform_3(%arg0: i32, %arg1: i32) -> (i32, i32, i32, i32) {
    %c0_i32 = arith.constant 0 : i32
    %c0_i32_0 = arith.constant 0 : i32
    %c0_i32_1 = arith.constant 0 : i32
    return %arg0, %arg1, %c0_i32, %c0_i32_0 : i32, i32, i32, i32
  }
}

</mosaic_0001>

<llo_original>
// kernel: tpu_custom_call.1
$region0: #{tpu_custom_call.1}
  #allocation0 [shape = 'u32[]', space=smem, size = 0x4, offset = 0x4, fixed_abs, tag = 'smem constant byte address 0x4 - core index']
  #allocation1 [shape = 'u32[144,128]{1,0:T(1,128)}', space=vmem, size = 0x12000, scoped, tag = 'internal scratch']
  %s0 = inlined_call_operand.hbm [shape: f32[2,4,256], index: 0, kind: input, shape index: {}]
  %s1 = inlined_call_operand.vmem [shape: s32[2,1,256], index: 1, kind: input, shape index: {}]
  %s2 = inlined_call_operand.vmem [shape: f32[1,4,1], index: 2, kind: input, shape index: {}]
  %s3 = inlined_call_operand.vmem [shape: f32[2,1,1,1], index: 3, kind: output, shape index: {}]
  %s4 = sld [smem:[#allocation0]]
  $region49: #{tpu_custom_call.1} parent=0
    _
  %s6 = ssub.s32 1, %s4
  %s7 = scalar_select 0, %s6, %s4
  $region1: #{tpu_custom_call.1} parent=0
    #allocation2 [shape = 'u8[8192]{0}', space=vmem, size = 0x2000, scoped, tag = 'input window, operand 0']
    #allocation3 [shape = 's32[2]{0}', space=sflag, size = 0x8, scoped, tag = 'scoped memory for tpu_custom_call.1']
    %8 = vsyncpa [#allocation3], 0
    %s9 = scalar_lea.sflag [#allocation3], 1
    %10 = vsyncpa %s9, 0
    loop: start=0, step=1, limit=4
    $region2: #{tpu_custom_call.1} parent=1 // loop_pre_header
      _
    $region3: #{tpu_custom_call.1} parent=1 // loop_header
      %s12 = sphi 0, %s16
      %p13 = scmp.ge.s32.totalorder %s12, 4
      %s19 = sphi 0, %s31
      %s20 = sphi 0, %s27
      %s21 = sphi 0, %s19
      %s22 = sphi 0, %s20
      %s23 = sphi 0, %s21
      %s24 = sphi 0, %s22
      %s36 = sphi 0, %s38
      %s39 = sphi 0, %s36
      %s40 = sphi 0, %s39
      %s56 = sphi 0, %s40
      %s64 = sphi 0, %s66
      %s67 = sphi 0, %s64
      %s68 = sphi 0, %s67
      %s84 = sphi 0, %s68
      %s88 = sphi 0, %s88
      %s90 = sphi 0, %s88
      %s91 = sphi 0, %s90
      %s105 = sphi 0, %s91
      %s113 = sphi 0, %s115
      %s116 = sphi 0, %s113
      %s117 = sphi 0, %s116
      %s133 = sphi 0, %s117
    $region4: #{tpu_custom_call.1} parent=1 // loop_header_branch
      %15 = sbr.rel (%p13) target = $region8
    $region5: #{tpu_custom_call.1} parent=1 // loop_body
      %s17 = ssub.s32 %s12, 1
      %s18 = ssub.s32 %s12, 2
      %s25 = sadd.s32 1, %s20
      %p26 = scmp.ge.s32.totalorder %s25, 1
      %s27 = scalar_select %p26, 0, %s25
      %s28 = sadd.s32 1, %s19
      %s29 = scalar_select %p26, %s28, %s19
      %p30 = scmp.ge.s32.totalorder %s29, 2
      %s31 = scalar_select %p30, 0, %s29
      %s32 = ssub.s32 %s19, %s31
      %s33 = ssub.s32 %s20, %s27
      %s34 = sor.u32 %s32, %s33
      %p35 = scmp.eq.s32.totalorder %s34, 0
      %s37 = sadd.s32 %s36, 1
      %s38 = scalar_select %p35, %s36, %s37
      %p41 = pneg %p35
      %p42 = scmp.eq.s32.totalorder %s12, 1
      %p43 = por %p41, %p42
      %p44 = scmp.ne.s32.totalorder %s36, %s39
      %p45 = scmp.eq.s32.totalorder %s12, 0
      %p46 = por %p44, %p45
      %p47 = scmp.ne.s32.totalorder %s36, %s39
      %p48 = scmp.eq.s32.totalorder %s17, 1
      %p49 = por %p47, %p48
      %p50 = scmp.ne.s32.totalorder %s39, %s40
      %p51 = scmp.eq.s32.totalorder %s17, 0
      %p52 = por %p50, %p51
      %p53 = scmp.ne.s32.totalorder %s39, %s40
      %p54 = scmp.eq.s32.totalorder %s18, 1
      %p55 = por %p53, %p54
      %p57 = scmp.ne.s32.totalorder %s40, %s56
      %p58 = scmp.eq.s32.totalorder %s18, 0
      %p59 = por %p57, %p58
      %s60 = ssub.s32 %s19, %s31
      %s61 = ssub.s32 %s20, %s27
      %s62 = sor.u32 %s60, %s61
      %p63 = scmp.eq.s32.totalorder %s62, 0
      %s65 = sadd.s32 %s64, 1
      %s66 = scalar_select %p63, %s64, %s65
      %p69 = pneg %p63
      %p70 = scmp.eq.s32.totalorder %s12, 1
      %p71 = por %p69, %p70
      %p72 = scmp.ne.s32.totalorder %s64, %s67
      %p73 = scmp.eq.s32.totalorder %s12, 0
      %p74 = por %p72, %p73
      %p75 = scmp.ne.s32.totalorder %s64, %s67
      %p76 = scmp.eq.s32.totalorder %s17, 1
      %p77 = por %p75, %p76
      %p78 = scmp.ne.s32.totalorder %s67, %s68
      %p79 = scmp.eq.s32.totalorder %s17, 0
      %p80 = por %p78, %p79
      %p81 = scmp.ne.s32.totalorder %s67, %s68
      %p82 = scmp.eq.s32.totalorder %s18, 1
      %p83 = por %p81, %p82
      %p85 = scmp.ne.s32.totalorder %s68, %s84
      %p86 = scmp.eq.s32.totalorder %s18, 0
      %p87 = por %p85, %p86
      %s89 = sadd.s32 %s88, 1
      %p92 = scmp.eq.s32.totalorder %s12, 1
      %p93 = scmp.ne.s32.totalorder %s88, %s90
      %p94 = scmp.eq.s32.totalorder %s12, 0
      %p95 = por %p93, %p94
      %p96 = scmp.ne.s32.totalorder %s88, %s90
      %p97 = scmp.eq.s32.totalorder %s17, 1
      %p98 = por %p96, %p97
      %p99 = scmp.ne.s32.totalorder %s90, %s91
      %p100 = scmp.eq.s32.totalorder %s17, 0
      %p101 = por %p99, %p100
      %p102 = scmp.ne.s32.totalorder %s90, %s91
      %p103 = scmp.eq.s32.totalorder %s18, 1
      %p104 = por %p102, %p103
      %p106 = scmp.ne.s32.totalorder %s91, %s105
      %p107 = scmp.eq.s32.totalorder %s18, 0
      %p108 = por %p106, %p107
      %s109 = ssub.s32 %s19, %s31
      %s110 = ssub.s32 %s20, %s27
      %s111 = sor.u32 %s109, %s110
      %p112 = scmp.eq.s32.totalorder %s111, 0
      %s114 = sadd.s32 %s113, 1
      %s115 = scalar_select %p112, %s113, %s114
      %p118 = pneg %p112
      %p119 = scmp.eq.s32.totalorder %s12, 1
      %p120 = por %p118, %p119
      %p121 = scmp.ne.s32.totalorder %s113, %s116
      %p122 = scmp.eq.s32.totalorder %s12, 0
      %p123 = por %p121, %p122
      %p124 = scmp.ne.s32.totalorder %s113, %s116
      %p125 = scmp.eq.s32.totalorder %s17, 1
      %p126 = por %p124, %p125
      %p127 = scmp.ne.s32.totalorder %s116, %s117
      %p128 = scmp.eq.s32.totalorder %s17, 0
      %p129 = por %p127, %p128
      %p130 = scmp.ne.s32.totalorder %s116, %s117
      %p131 = scmp.eq.s32.totalorder %s18, 1
      %p132 = por %p130, %p131
      %p134 = scmp.ne.s32.totalorder %s117, %s133
      %p135 = scmp.eq.s32.totalorder %s18, 0
      %p136 = por %p134, %p135
      %p137 = scmp.le.s32.totalorder 1, %s12
      %p138 = scmp.lt.s32.totalorder %s12, 3
      %p139 = pnand %p137, %p138
      %p140 = pneg %p139
      // Predicated region
      $region9: #{tpu_custom_call.1} parent=5 // pred_check
        _
      $region10: #{tpu_custom_call.1} parent=5 // pred_check_branch
        %142 = sbr.rel (%p139) target = $region12
      $region11: #{tpu_custom_call.1} parent=5 // pred_region
        %s143 = ssub.s32 %s12, 1
        // Predicated region
        $region13: #{tpu_custom_call.1} parent=11 // pred_check
          %p144 = pneg %p101
        $region14: #{tpu_custom_call.1} parent=11 // pred_check_branch
          %146 = sbr.rel (%p144) target = $region16
        $region15: #{tpu_custom_call.1} parent=11 // pred_region
          _
        $region16: #{tpu_custom_call.1} parent=11 // pred_fallthru
          _
      $region12: #{tpu_custom_call.1} parent=5 // pred_fallthru
        _
      %p147 = scmp.lt.s32.totalorder %s12, 2
      // Predicated region
      $region17: #{tpu_custom_call.1} parent=5 // pred_check
        %p148 = pneg %p147
      $region18: #{tpu_custom_call.1} parent=5 // pred_check_branch
        %150 = sbr.rel (%p148) target = $region20
      $region19: #{tpu_custom_call.1} parent=5 // pred_region
        // Predicated region
        $region21: #{tpu_custom_call.1} parent=19 // pred_check
          %p151 = pneg %p46
        $region22: #{tpu_custom_call.1} parent=19 // pred_check_branch
          %153 = sbr.rel (%p151) target = $region24
        $region23: #{tpu_custom_call.1} parent=19 // pred_region
          %s154 = sand.u32 %s36, 1
          %s155 = scalar_lea.sflag [#allocation3], %s154
          %s156 = sand.u32 %s36, 1
          %s157 = smul.addr %s156, 8
          %s158 = scalar_lea.vmem [#allocation2], %s157
          %s159 = smul.u32 2, %s20
          %s161 = ssub.s32 128, 128
          %162 = vsyncadd %s155, %s161
          %s163 = smul.addr %s19, 2
          %s164 = sadd.s32 %s159, %s163
          %s165 = smul.addr %s164, 64
          %s166 = scalar_lea.hbm %s0, %s165
          %s168 = sshll.u32 %s158, 4
          %s169 = int_to_ptr.vmem [resolvable:$true] %s168
          %171 = dma.hbm_to_vmem [thread:$0]  %s166, 128, %s169, %s155
        $region24: #{tpu_custom_call.1} parent=19 // pred_fallthru
          _
        // Predicated region
        $region25: #{tpu_custom_call.1} parent=19 // pred_check
          %p172 = pneg %p74
        $region26: #{tpu_custom_call.1} parent=19 // pred_check_branch
          %174 = sbr.rel (%p172) target = $region28
        $region27: #{tpu_custom_call.1} parent=19 // pred_region
          %s175 = smul.u32 2, %s20
          %p176 = scmp.lt.s32.totalorder %s19, 1
          %s177 = scalar_select %p176, %s19, 1
          %p178 = scmp.lt.s32.totalorder %s175, 1
          %s179 = scalar_select %p178, %s175, 1
          %s180 = smul.addr %s177, 2
          %s181 = sadd.s32 %s179, %s180
          %s182 = scalar_lea.vmem %s1, %s181
          %s183 = smul.u32 2, %s20
        $region28: #{tpu_custom_call.1} parent=19 // pred_fallthru
          _
      $region20: #{tpu_custom_call.1} parent=5 // pred_fallthru
        _
      %p184 = scmp.le.s32.totalorder 1, %s12
      %p185 = scmp.lt.s32.totalorder %s12, 3
      %p186 = pnand %p184, %p185
      %p187 = pneg %p186
      // Predicated region
      $region29: #{tpu_custom_call.1} parent=5 // pred_check
        _
      $region30: #{tpu_custom_call.1} parent=5 // pred_check_branch
        %189 = sbr.rel (%p186) target = $region32
      $region31: #{tpu_custom_call.1} parent=5 // pred_region
        %s190 = ssub.s32 %s12, 1
        %s191 = sand.u32 %s39, 1
        %s192 = scalar_lea.sflag [#allocation3], %s191
        %s193 = sand.u32 %s39, 1
        %s194 = smul.addr %s193, 8
        %s195 = scalar_lea.vmem [#allocation2], %s194
        // Predicated region
        $region33: #{tpu_custom_call.1} parent=31 // pred_check
          %p196 = pneg %p52
        $region34: #{tpu_custom_call.1} parent=31 // pred_check_branch
          %198 = sbr.rel (%p196) target = $region36
        $region35: #{tpu_custom_call.1} parent=31 // pred_region
          %199 = dma.done %s192, 128
        $region36: #{tpu_custom_call.1} parent=31 // pred_fallthru
          _
        %s200 = sand.u32 %s39, 1
        %s201 = scalar_lea.sflag [#allocation3], %s200
        %s202 = sand.u32 %s39, 1
        %s203 = smul.addr %s202, 8
        %s204 = scalar_lea.vmem [#allocation2], %s203
        %p205 = pneg %p52
        %p206 = pneg %p49
        %s207 = smul.u32 2, %s22
        %p208 = scmp.lt.s32.totalorder %s21, 1
        %s209 = scalar_select %p208, %s21, 1
        %p210 = scmp.lt.s32.totalorder %s207, 1
        %s211 = scalar_select %p210, %s207, 1
        %s212 = smul.addr %s209, 2
        %s213 = sadd.s32 %s211, %s212
        %s214 = scalar_lea.vmem %s1, %s213
        %p215 = pneg %p80
        %p216 = pneg %p77
        %p217 = pneg %p101
        %p218 = pneg %p98
        %p219 = pneg %p129
        %p220 = pneg %p126
        %p221 = scmp.lt.s32.totalorder %s21, 1
        %s222 = scalar_select %p221, %s21, 1
        %p223 = scmp.lt.s32.totalorder %s22, 0
        %s224 = scalar_select %p223, %s22, 0
        %s225 = sadd.s32 %s224, %s222
        %s226 = scalar_lea.vmem %s3, %s225
        %s227 = smul.u32 2, %s22
        %s228 = smul.u32 2, %s22
        %p229 = scmp.lt.s32.totalorder %s21, 1
        %s230 = scalar_select %p229, %s21, 1
        %p231 = scmp.lt.s32.totalorder %s228, 1
        %s232 = scalar_select %p231, %s228, 1
        %s233 = smul.addr %s230, 2
        %s234 = sadd.s32 %s232, %s233
        %s235 = scalar_lea.vmem %s1, %s234
        %s236 = smul.u32 2, %s22
        %p237 = scmp.lt.s32.totalorder %s21, 1
        %s238 = scalar_select %p237, %s21, 1
        %p239 = scmp.lt.s32.totalorder %s22, 0
        %s240 = scalar_select %p239, %s22, 0
        %s241 = sadd.s32 %s240, %s238
        %s242 = scalar_lea.vmem %s3, %s241
        %v243 = vld [vmem:[%s195] sm:$0xff]
        %v244 = vld [vmem:[%s235] sm:$0x3]
        %v245 = vld [vmem:[%s2] sm:$0xf]
        %v247 = vcombine.high %v243, %v243
        %vm249 = vcmask 1043456
        %v250 = vsel %vm249, %v243, -inf
        %v251 = vrot.slane %v250, 4
        %v252 = vmax.f32 %v250, %v251
        %v253 = vrot.slane %v252, 2
        %v254 = vmax.f32 %v252, %v253
        %v255 = vrot.slane %v254, 1
        %v256 = vmax.f32 %v254, %v255
        %v257 = vsel %vm249, %v247, -inf
        %v258 = vrot.slane %v257, 4
        %v259 = vmax.f32 %v257, %v258
        %v260 = vrot.slane %v259, 2
        %v261 = vmax.f32 %v259, %v260
        %v262 = vrot.slane %v261, 1
        %v263 = vmax.f32 %v261, %v262
        %v266 = vcombine.low %v256, %v263
        %v268 = vsub.f32 %v243, %v266
        %v269 = vmul.f32 %v268, 1.442695
        %v270 = vpow.pop %v269
        %v272 = vcombine.high %v270, %v270
        %v274 = vsel %vm249, %v270, 0.0
        %v275 = vrot.slane %v274, 4
        %v276 = vadd.f32 %v274, %v275
        %v277 = vrot.slane %v276, 2
        %v278 = vadd.f32 %v276, %v277
        %v279 = vrot.slane %v278, 1
        %v280 = vadd.f32 %v278, %v279
        %v281 = vsel %vm249, %v272, 0.0
        %v282 = vrot.slane %v281, 4
        %v283 = vadd.f32 %v281, %v282
        %v284 = vrot.slane %v283, 2
        %v285 = vadd.f32 %v283, %v284
        %v286 = vrot.slane %v285, 1
        %v287 = vadd.f32 %v285, %v286
        %v288 = vlog2.pop %v280
        %v289 = vmul.f32 %v288, 0.6931472
        %v290 = vlog2.pop %v287
        %v291 = vmul.f32 %v290, 0.6931472
        %v292 = vadd.f32 %v256, %v289
        %v293 = vadd.f32 %v263, %v291
        %v294 = vlaneseq
        %v295 = vshrl.u32 %v294, 7
        %v296 = vlaneseq
        %v297 = vshrl.u32 %v296, 7
        %v298 = vsub.s32 0, %v297
        %v299 = vrot.slane %v244, %v298
        %v300 = vlaneseq
        %v301 = vshrl.u32 %v300, 7
        %v302 = vsub.s32 1, %v301
        %v303 = vrot.slane %v244, %v302
        %vm304 = vcmp.eq.s32.totalorder %v295, %v299
        %vm305 = vcmp.eq.s32.totalorder %v295, %v303
        %v306 = vsel %vm304, %v243, 0.0
        %v307 = vsel %vm305, %v247, 0.0
        %v308 = vsel %vm249, %v306, 0.0
        %v309 = vrot.slane %v308, 4
        %v310 = vadd.f32 %v308, %v309
        %v311 = vrot.slane %v310, 2
        %v312 = vadd.f32 %v310, %v311
        %v313 = vrot.slane %v312, 1
        %v314 = vadd.f32 %v312, %v313
        %v315 = vsel %vm249, %v307, 0.0
        %v316 = vrot.slane %v315, 4
        %v317 = vadd.f32 %v315, %v316
        %v318 = vrot.slane %v317, 2
        %v319 = vadd.f32 %v317, %v318
        %v320 = vrot.slane %v319, 1
        %v321 = vadd.f32 %v319, %v320
        %v322 = vsub.f32 %v314, %v292
        %v323 = vsub.f32 %v321, %v293
        %v324 = vmul.f32 %v322, 1.442695
        %v325 = vpow.pop %v324
        %v326 = vmul.f32 %v323, 1.442695
        %v327 = vpow.pop %v326
        %329 = vset.pattern.permute.xlu0 0
        %330 = vperm.xlu0 %329, %v245
        %v331 = vpop.permute.xlu0 %330
        %v333 = vsel %vm304, %v331, 0.0
        %v334 = vsel %vm305, %v331, 0.0
        %v335 = vsel %vm249, %v333, 0.0
        %v336 = vrot.slane %v335, 4
        %v337 = vadd.f32 %v335, %v336
        %v338 = vrot.slane %v337, 2
        %v339 = vadd.f32 %v337, %v338
        %v340 = vrot.slane %v339, 1
        %v341 = vadd.f32 %v339, %v340
        %v342 = vsel %vm249, %v334, 0.0
        %v343 = vrot.slane %v342, 4
        %v344 = vadd.f32 %v342, %v343
        %v345 = vrot.slane %v344, 2
        %v346 = vadd.f32 %v344, %v345
        %v347 = vrot.slane %v346, 1
        %v348 = vadd.f32 %v346, %v347
        %v349 = vsub.f32 1.0, %v325
        %v350 = vsub.f32 1.0, %v327
        %v351 = vmul.f32 %v349, %v349
        %v352 = vmul.f32 %v350, %v350
        %v353 = vsub.f32 0.0, %v351
        %v354 = vsub.f32 0.0, %v352
        %v355 = vmul.f32 %v322, %v341
        %v356 = vmul.f32 %v323, %v348
        %v357 = vmul.f32 %v353, %v355
        %v358 = vmul.f32 %v354, %v356
        %s359 = smul.u32 %s22, 256
        %v360 = vlaneseq
        %v361 = vand.u32 %v360, 127
        %v362 = vadd.s32 %v361, 128
        %v363 = vstv %s359
        %v364 = vadd.s32 %v363, %v361
        %v365 = vadd.s32 %v363, %v362
        %vm366 = vcmp.lt.s32.totalorder %v364, 256
        %vm367 = vcmp.lt.s32.totalorder %v365, 256
        %v368 = vsel %vm366, %v357, 0.0
        %v369 = vsel %vm367, %v358, 0.0
        %vm370 = vcmask 1040384
        %v371 = vsel %vm370, %v368, 0.0
        %v372 = vsel %vm370, %v369, 0.0
        %v373 = vadd.f32 %v371, %v372
        %374 = vadd.xlane.f32.xlu0 %v373
        %v375 = vpop.xlane.xlu0 %374
        %v376 = vrot.slane %v375, 4
        %v377 = vadd.f32 %v375, %v376
        %v378 = vrot.slane %v377, 2
        %v379 = vadd.f32 %v377, %v378
        %v380 = vrot.slane %v379, 1
        %v381 = vadd.f32 %v379, %v380
        %s382 = vtos %v381
        %v383 = vstv %s382
        %vm384 = vcmask 0
        %385 = vst.msk [vmem:[%s242] sm:$0x1] %vm384, %v383
        %p386 = scmp.lt.s32.totalorder %s21, 1
        %s387 = scalar_select %p386, %s21, 1
        %p388 = scmp.lt.s32.totalorder %s22, 0
        %s389 = scalar_select %p388, %s22, 0
        %s390 = sadd.s32 %s389, %s387
        %s391 = scalar_lea.vmem %s3, %s390
        // Predicated region
        $region37: #{tpu_custom_call.1} parent=31 // pred_check
          %p392 = pneg %p126
        $region38: #{tpu_custom_call.1} parent=31 // pred_check_branch
          %394 = sbr.rel (%p392) target = $region40
        $region39: #{tpu_custom_call.1} parent=31 // pred_region
          _
        $region40: #{tpu_custom_call.1} parent=31 // pred_fallthru
          _
      $region32: #{tpu_custom_call.1} parent=5 // pred_fallthru
        _
      %p395 = scmp.le.s32.totalorder 2, %s12
      // Predicated region
      $region41: #{tpu_custom_call.1} parent=5 // pred_check
        %p396 = pneg %p395
      $region42: #{tpu_custom_call.1} parent=5 // pred_check_branch
        %398 = sbr.rel (%p396) target = $region44
      $region43: #{tpu_custom_call.1} parent=5 // pred_region
        %s399 = ssub.s32 %s12, 2
        // Predicated region
        $region45: #{tpu_custom_call.1} parent=43 // pred_check
          %p400 = pneg %p132
        $region46: #{tpu_custom_call.1} parent=43 // pred_check_branch
          %402 = sbr.rel (%p400) target = $region48
        $region47: #{tpu_custom_call.1} parent=43 // pred_region
          %p403 = scmp.lt.s32.totalorder %s23, 1
          %s404 = scalar_select %p403, %s23, 1
          %p405 = scmp.lt.s32.totalorder %s24, 0
          %s406 = scalar_select %p405, %s24, 0
          %s407 = sadd.s32 %s406, %s404
          %s408 = scalar_lea.vmem %s3, %s407
        $region48: #{tpu_custom_call.1} parent=43 // pred_fallthru
          _
      $region44: #{tpu_custom_call.1} parent=5 // pred_fallthru
        _
    $region6: #{tpu_custom_call.1} parent=1 // loop_footer
      %s16 = sadd.s32 1, %s12
    $region7: #{tpu_custom_call.1} parent=1 // loop_footer_branch
      %11 = sbr.rel target = $region3
    $region8: #{tpu_custom_call.1} parent=1 // loop_exit
      _
    %409 = vsyncpa [#allocation3], 1
    %s410 = scalar_lea.sflag [#allocation3], 1
    %411 = vsyncpa %s410, 1

</llo_original>
